<compile_context>
chip_gen: v7x
topology: tpu7x:2x2x1
jax: 0.10.0
libtpu: 0.0.40
codegen_flags: <defaults>
</compile_context>

<pallas_src>
import math

import jax
import jax.numpy as jnp
from jax.experimental import pallas as pl
from jax.experimental.pallas import tpu as pltpu


def _round_up(x, m):
    return ((x + m - 1) // m) * m


def _choose_row_tile(n_rows, max_tile=1024):
    """Row tile: multiple of 8 (f32 sublanes); >=2 grid steps when possible so
    both v7x TensorCores get work; capped to keep VMEM double-buffers small."""
    if n_rows <= 8:
        return 8
    return min(max_tile, _round_up(pl.cdiv(n_rows, 2), 8))


# -----------------------------------------------------------------------------
# Text-branch kernel: row-tiled projection  o[i*tile:(i+1)*tile] = bf16(x) @ w
#   x: (R, K) f32 (cast to bf16 in-kernel),  w: (K, E) bf16,  o: (R, E) f32
# -----------------------------------------------------------------------------
def rowproj_kernel(x_ref, w_ref, o_ref):
    x = x_ref[...].astype(jnp.bfloat16)            # VPU cast, no extra HBM pass
    o_ref[...] = jnp.dot(x, w_ref[...], preferred_element_type=jnp.float32)


def project_rows(x, w_bf16, *, max_tile=1024):
    """x: (R, K) f32; w_bf16: (K, E) bf16 -> (R, E) f32 = bf16(x) @ w."""
    R, K = x.shape
    K2, E = w_bf16.shape
    assert K == K2
    tile = _choose_row_tile(R, max_tile)
    grid = pl.cdiv(R, tile)                        # ragged last block is fine
    cost = pl.CostEstimate(
        flops=2 * R * K * E, transcendentals=0,
        bytes_accessed=R * K * 4 + K * E * 2 + R * E * 4)
    return pl.pallas_call(
        rowproj_kernel,
        out_shape=jax.ShapeDtypeStruct((R, E), jnp.float32),
        grid_spec=pltpu.PrefetchScalarGridSpec(
            num_scalar_prefetch=0,
            grid=(grid,),
            in_specs=[pl.BlockSpec((tile, K), lambda i: (i, 0)),
                      pl.BlockSpec((K, E), lambda i: (0, 0))],   # resident weight
            out_specs=pl.BlockSpec((tile, E), lambda i: (i, 0)),
        ),
        compiler_params=pltpu.CompilerParams(
            dimension_semantics=("parallel",)),
        cost_estimate=cost,
    )(x, w_bf16)


# -----------------------------------------------------------------------------
# Image-branch kernel (per-batch grid): writes CLS row + projected patches
# straight into the (B, N+1, E) output (and the masked prefix into its own
# (B, n_keep+1, E) output) -- no wrapper concat / slice copies.
# -----------------------------------------------------------------------------
def _make_image_kernel(n_keep):
    def kernel(patches_ref, cls_ref, w_ref, unmasked_ref, *masked_refs):
        x = patches_ref[0].astype(jnp.bfloat16)                 # (N, CPP) bf16
        proj = jnp.dot(x, w_ref[...], preferred_element_type=jnp.float32)
        n = proj.shape[0]
        cls_row = cls_ref[...]                                  # (1, E) f32
        unmasked_ref[0, pl.ds(0, 1), :] = cls_row
        unmasked_ref[0, pl.ds(1, n), :] = proj
        if n_keep is not None:
            masked_ref = masked_refs[0]
            masked_ref[0, pl.ds(0, 1), :] = cls_row
            masked_ref[0, pl.ds(1, n_keep), :] = proj[:n_keep]
    return kernel


# -----------------------------------------------------------------------------
# Plain-JAX glue
# -----------------------------------------------------------------------------
def extract_patches(images, patch_size):
    """NCHW images -> (B, N_patches, C*P*P) patch matrix (conv-unfold equiv.)."""
    B, C, H, W = images.shape
    P = patch_size
    gh, gw = H // P, W // P
    x = images.reshape(B, C, gh, P, gw, P)
    x = x.transpose(0, 2, 4, 1, 3, 5)              # (B, gh, gw, C, P, P)
    return x.reshape(B, gh * gw, C * P * P)


class MaskedClipPallas:
    """Deterministic Pallas re-implementation of Masked_Clip.forward."""

    CLS_ID = 101

    def __init__(self, embed_dim, image_resolution, vision_layers, vision_width,
                 vision_patch_size, text_encoder_width, image_mask,
                 text_mask=False, vocab_size=512, seed=0):
        del vision_layers  # transformer depth of Masked_Vit (not reproduced)
        self.embed_dim = embed_dim
        self.image_resolution = image_resolution
        self.vision_width = vision_width
        self.patch_size = vision_patch_size
        self.text_encoder_width = text_encoder_width
        self.image_mask = image_mask
        self.text_mask = text_mask

        keys = jax.random.split(jax.random.PRNGKey(seed), 5)
        cpp = 3 * vision_patch_size * vision_patch_size

        # ViT stand-in parameters.
        # TODO(synk): Masked_Vit's transformer blocks / LayerNorms are not
        #             defined in the source file; only patch-embed + output
        #             projection are reproduced (so they fuse into one matmul).
        self.w_patch = (jax.random.normal(keys[0], (cpp, vision_width),
                                          jnp.float32) * cpp ** -0.5)
        self.cls_token = (jax.random.normal(keys[1], (1, vision_width),
                                            jnp.float32) * vision_width ** -0.5)
        self.w_vis_proj = (jax.random.normal(keys[2], (vision_width, embed_dim),
                                             jnp.float32) * vision_width ** -0.5)

        # Fused image-branch weight (no nonlinearity between the two matmuls),
        # pre-cast to bf16 once at init.
        self.w_fused = (self.w_patch @ self.w_vis_proj).astype(jnp.bfloat16)
        # Constant CLS feature row, computed through the same bf16/f32-acc path
        # as the kernel so all output rows share one precision.
        self.cls_feat = jnp.dot(self.cls_token.astype(jnp.bfloat16),
                                self.w_vis_proj.astype(jnp.bfloat16),
                                preferred_element_type=jnp.float32)   # (1, E)

        # Text branch parameters.
        # TODO(synk): BioClinical-BERT text encoder is an external checkpoint;
        #             its last_hidden_state is emulated by a deterministic
        #             embedding-table lookup.
        self.tok_embed = (jax.random.normal(keys[3],
                                            (vocab_size, text_encoder_width),
                                            jnp.float32)
                          * text_encoder_width ** -0.5)
        # nn.init.normal_(text_projection, std=text_encoder_width ** -0.5)
        self.text_projection = (jax.random.normal(
            keys[4], (text_encoder_width, embed_dim), jnp.float32)
            * text_encoder_width ** -0.5)
        self.text_proj = self.text_projection.astype(jnp.bfloat16)

    # ---- image branch -------------------------------------------------------
    def encode_image(self, images, mask_ratio):
        patches = extract_patches(images, self.patch_size)      # (B, N, CPP) f32
        B, N, CPP = patches.shape
        E = self.embed_dim
        n_keep = (max(1, int(math.floor(N * (1.0 - mask_ratio))))
                  if mask_ratio else None)
        # TODO(synk): Masked_Vit's random patch shuffling is undefined in the
        #             source file; a deterministic prefix keep is used, so the
        #             masked feats are CLS + the first n_keep patch rows.

        out_shape = [jax.ShapeDtypeStruct((B, N + 1, E), jnp.float32)]
        out_specs = [pl.BlockSpec((1, N + 1, E), lambda b: (b, 0, 0))]
        out_bytes = B * (N + 1) * E * 4
        if n_keep is not None:
            out_shape.append(jax.ShapeDtypeStruct((B, n_keep + 1, E),
                                                  jnp.float32))
            out_specs.append(pl.BlockSpec((1, n_keep + 1, E),
                                          lambda b: (b, 0, 0)))
            out_bytes += B * (n_keep + 1) * E * 4

        cost = pl.CostEstimate(
            flops=2 * B * N * CPP * E, transcendentals=0,
            bytes_accessed=B * N * CPP * 4 + CPP * E * 2 + E * 4 + out_bytes)

        outs = pl.pallas_call(
            _make_image_kernel(n_keep),
            out_shape=tuple(out_shape),
            grid_spec=pltpu.PrefetchScalarGridSpec(
                num_scalar_prefetch=0,
                grid=(B,),                               # >=2 steps for B>=2
                in_specs=[pl.BlockSpec((1, N, CPP), lambda b: (b, 0, 0)),
                          pl.BlockSpec((1, E), lambda b: (0, 0)),
                          pl.BlockSpec((CPP, E), lambda b: (0, 0))],
                out_specs=tuple(out_specs),
            ),
            compiler_params=pltpu.CompilerParams(
                dimension_semantics=("parallel",)),
            cost_estimate=cost,
        )(patches, self.cls_feat, self.w_fused)

        ret = {"unmasked_image_feats": outs[0]}
        if n_keep is not None:
            ret["masked_image_feats"] = outs[1]
        return ret

    # ---- text branch --------------------------------------------------------
    def encode_text(self, text):
        input_ids = text["input_ids"]
        attention_mask = text["attention_mask"]
        B, L = input_ids.shape
        E = self.embed_dim

        last_hidden = (jnp.take(self.tok_embed, input_ids, axis=0)
                       * attention_mask[..., None].astype(jnp.float32))
        feats = project_rows(
            last_hidden.reshape(B * L, self.text_encoder_width),
            self.text_proj).reshape(B, L, E)

        # CLS gather in plain JAX (cheap). Note: rows with no CLS id fall back
        # to position 0 via argmax (original torch code assumes one CLS/row).
        cls_pos = jnp.argmax(input_ids == self.CLS_ID, axis=1).astype(jnp.int32)
        feat = jnp.take_along_axis(feats, cls_pos[:, None, None], axis=1)[:, 0]
        return {"text_feat": feat, "text_feats": feats}

    # ---- forward ------------------------------------------------------------
    def forward(self, batch):
        images = batch["images"]
        texts = {"input_ids": batch["caption_ids"],
                 "attention_mask": batch["attention_mask"]}
        if images is None or texts is None:
            raise RuntimeError("Missing Image OR Text in the input")

        total = {}
        image_ret = self.encode_image(images, self.image_mask)
        unmasked_image_feats = image_ret["unmasked_image_feats"]
        total["unmasked_image_feats"] = unmasked_image_feats
        total["unmasked_image_feat"] = unmasked_image_feats[:, 0]

        text_out = self.encode_text(texts)
        total["unmasked_text_feat"] = text_out["text_feat"]
        total["unmasked_text_feats"] = text_out["text_feats"]

        if self.image_mask:
            total["masked_image_feats"] = image_ret["masked_image_feats"]
        if self.text_mask:
            masked_texts = {"input_ids": batch["mlm_ids"],
                            "attention_mask": batch["attention_mask"]}
            total["masked_text_feats"] = self.encode_text(masked_texts)["text_feats"]
        return total


# -----------------------------------------------------------------------------
if __name__ == "__main__":
    B, C, RES, PATCH = 2, 3, 16, 8
    EMBED, VIS_W, TXT_W, L, VOCAB = 32, 48, 64, 8, 512

    model = MaskedClipPallas(
        embed_dim=EMBED, image_resolution=RES, vision_layers=2,
        vision_width=VIS_W, vision_patch_size=PATCH,
        text_encoder_width=TXT_W, image_mask=0.5, text_mask=False,
        vocab_size=VOCAB, seed=0)

    key = jax.random.PRNGKey(0)
    k_img, k_tok = jax.random.split(key)
    images = jax.random.normal(k_img, (B, C, RES, RES), jnp.float32)
    caption_ids = jax.random.randint(k_tok, (B, L), 0, VOCAB, jnp.int32)
    # place the CLS token (id 101) deterministically, one per row
    caption_ids = caption_ids.at[0, 0].set(101).at[1, 3].set(101)
    attention_mask = jnp.ones((B, L), jnp.int32)

    batch = {"images": images, "caption_ids": caption_ids,
             "attention_mask": attention_mask}

    out = model.forward(batch)
    out = jax.tree_util.tree_map(jax.block_until_ready, out)

    # ---- correctness check against a plain-JAX reference of the same math ---
    # (same bf16 operands + f32 accumulation as the kernel path)
    def ref_proj(x2d, w_bf16):
        return jnp.dot(x2d.astype(jnp.bfloat16), w_bf16,
                       preferred_element_type=jnp.float32)

    last_hidden = model.tok_embed[caption_ids] * attention_mask[..., None]
    ref_feats = ref_proj(last_hidden.reshape(B * L, TXT_W),
                         model.text_proj).reshape(B, L, EMBED)
    cls_pos = jnp.argmax(caption_ids == 101, axis=1)
    ref_feat = ref_feats[jnp.arange(B), cls_pos]
    assert jnp.allclose(out["unmasked_text_feats"], ref_feats,
                        atol=1e-3, rtol=1e-3)
    assert jnp.allclose(out["unmasked_text_feat"], ref_feat,
                        atol=1e-3, rtol=1e-3)

    patches = extract_patches(images, PATCH)
    N = patches.shape[1]
    ref_proj_img = ref_proj(patches.reshape(B * N, patches.shape[-1]),
                            model.w_fused).reshape(B, N, EMBED)
    ref_img = jnp.concatenate(
        [jnp.broadcast_to(model.cls_feat[None], (B, 1, EMBED)), ref_proj_img],
        axis=1)
    assert jnp.allclose(out["unmasked_image_feats"], ref_img,
                        atol=1e-3, rtol=1e-3)
    assert jnp.allclose(out["unmasked_image_feat"], ref_img[:, 0],
                        atol=1e-3, rtol=1e-3)
    n_keep = max(1, int(math.floor(N * (1.0 - model.image_mask))))
    assert out["masked_image_feats"].shape == (B, n_keep + 1, EMBED)
    assert jnp.allclose(out["masked_image_feats"],
                        ref_img[:, :n_keep + 1], atol=1e-3, rtol=1e-3)

    print("KERNEL_OK")
</pallas_src>

<mosaic_0001>
module attributes {stable_mosaic.version = 11 : i64} {
  func.func @kernel(%arg0: i32, %arg1: memref<1x4x192xf32, #tpu.memory_space<vmem>>, %arg2: memref<1x32xf32, #tpu.memory_space<vmem>>, %arg3: memref<192x32xbf16, #tpu.memory_space<vmem>>, %arg4: memref<1x5x32xf32, #tpu.memory_space<vmem>>, %arg5: memref<1x3x32xf32, #tpu.memory_space<vmem>>) attributes {dimension_semantics = [#tpu.dimension_semantics<parallel>], iteration_bounds = array<i64: 2>, scalar_prefetch = 0 : i64, scratch_operands = 0 : i64, tpu.core_type = #tpu.core_type<tc>, window_params = [{transform_indices = @transform_0, window_bounds = array<i64: 1, 4, 192>}, {pipeline_mode = #tpu.pipeline_mode<synchronous>, transform_indices = @transform_1, window_bounds = array<i64: 1, 32>}, {pipeline_mode = #tpu.pipeline_mode<synchronous>, transform_indices = @transform_2, window_bounds = array<i64: 192, 32>}, {transform_indices = @transform_3, window_bounds = array<i64: 1, 5, 32>}, {transform_indices = @transform_4, window_bounds = array<i64: 1, 3, 32>}]} {
    %c0 = arith.constant 0 : index
    %c0_0 = arith.constant 0 : index
    %c0_1 = arith.constant 0 : index
    %0 = vector.load %arg1[%c0, %c0_0, %c0_1] : memref<1x4x192xf32, #tpu.memory_space<vmem>>, vector<1x4x192xf32>
    %1 = vector.shape_cast %0 : vector<1x4x192xf32> to vector<4x192xf32>
    %2 = arith.truncf %1 : vector<4x192xf32> to vector<4x192xbf16>
    %c0_2 = arith.constant 0 : index
    %c0_3 = arith.constant 0 : index
    %3 = vector.load %arg3[%c0_2, %c0_3] : memref<192x32xbf16, #tpu.memory_space<vmem>>, vector<192x32xbf16>
    %cst = arith.constant dense<0.000000e+00> : vector<4x32xf32>
    %4 = tpu.matmul %2, %3, %cst {dimension_numbers = #tpu.dot_dimension_numbers<[1], [0], [0], [1], [0, 0, 1, 1], [], []>} : vector<4x192xbf16>, vector<192x32xbf16>, vector<4x32xf32> -> vector<4x32xf32>
    %c0_4 = arith.constant 0 : index
    %c0_5 = arith.constant 0 : index
    %5 = vector.load %arg2[%c0_4, %c0_5] : memref<1x32xf32, #tpu.memory_space<vmem>>, vector<1x32xf32>
    %c0_6 = arith.constant 0 : index
    %c0_7 = arith.constant 0 : index
    %c0_8 = arith.constant 0 : index
    %6 = vector.load %arg4[%c0_6, %c0_7, %c0_8] : memref<1x5x32xf32, #tpu.memory_space<vmem>>, vector<1x1x32xf32>
    %7 = vector.shape_cast %6 : vector<1x1x32xf32> to vector<1x32xf32>
    %8 = vector.shape_cast %5 : vector<1x32xf32> to vector<1x1x32xf32>
    tpu.vector_store %arg4[%c0_6, %c0_7, %c0_8], %8 {strides = array<i32>} : memref<1x5x32xf32, #tpu.memory_space<vmem>>, vector<1x1x32xf32>,
    %c0_9 = arith.constant 0 : index
    %c1 = arith.constant 1 : index
    %c0_10 = arith.constant 0 : index
    %9 = vector.load %arg4[%c0_9, %c1, %c0_10] : memref<1x5x32xf32, #tpu.memory_space<vmem>>, vector<1x4x32xf32>
    %10 = vector.shape_cast %9 : vector<1x4x32xf32> to vector<4x32xf32>
    %11 = vector.shape_cast %4 : vector<4x32xf32> to vector<1x4x32xf32>
    tpu.vector_store %arg4[%c0_9, %c1, %c0_10], %11 {strides = array<i32>} : memref<1x5x32xf32, #tpu.memory_space<vmem>>, vector<1x4x32xf32>,
    %c0_11 = arith.constant 0 : index
    %c0_12 = arith.constant 0 : index
    %c0_13 = arith.constant 0 : index
    %12 = vector.load %arg5[%c0_11, %c0_12, %c0_13] : memref<1x3x32xf32, #tpu.memory_space<vmem>>, vector<1x1x32xf32>
    %13 = vector.shape_cast %12 : vector<1x1x32xf32> to vector<1x32xf32>
    %14 = vector.shape_cast %5 : vector<1x32xf32> to vector<1x1x32xf32>
    tpu.vector_store %arg5[%c0_11, %c0_12, %c0_13], %14 {strides = array<i32>} : memref<1x3x32xf32, #tpu.memory_space<vmem>>, vector<1x1x32xf32>,
    %15 = vector.extract_strided_slice %4 {offsets = [0, 0], sizes = [2, 32], strides = [1, 1]} : vector<4x32xf32> to vector<2x32xf32>
    %c0_14 = arith.constant 0 : index
    %c1_15 = arith.constant 1 : index
    %c0_16 = arith.constant 0 : index
    %16 = vector.load %arg5[%c0_14, %c1_15, %c0_16] : memref<1x3x32xf32, #tpu.memory_space<vmem>>, vector<1x2x32xf32>
    %17 = vector.shape_cast %16 : vector<1x2x32xf32> to vector<2x32xf32>
    %18 = vector.shape_cast %15 : vector<2x32xf32> to vector<1x2x32xf32>
    tpu.vector_store %arg5[%c0_14, %c1_15, %c0_16], %18 {strides = array<i32>} : memref<1x3x32xf32, #tpu.memory_space<vmem>>, vector<1x2x32xf32>,
    return
  }
  func.func @transform_0(%arg0: i32) -> (i32, i32, i32) {
    %c0_i32 = arith.constant 0 : i32
    %c0_i32_0 = arith.constant 0 : i32
    %c0_i32_1 = arith.constant 0 : i32
    return %arg0, %c0_i32, %c0_i32_0 : i32, i32, i32
  }
  func.func @transform_1(%arg0: i32) -> (i32, i32) {
    %c0_i32 = arith.constant 0 : i32
    %c0_i32_0 = arith.constant 0 : i32
    %c0_i32_1 = arith.constant 0 : i32
    return %c0_i32, %c0_i32_0 : i32, i32
  }
  func.func @transform_2(%arg0: i32) -> (i32, i32) {
    %c0_i32 = arith.constant 0 : i32
    %c0_i32_0 = arith.constant 0 : i32
    %c0_i32_1 = arith.constant 0 : i32
    return %c0_i32, %c0_i32_0 : i32, i32
  }
  func.func @transform_3(%arg0: i32) -> (i32, i32, i32) {
    %c0_i32 = arith.constant 0 : i32
    %c0_i32_0 = arith.constant 0 : i32
    %c0_i32_1 = arith.constant 0 : i32
    return %arg0, %c0_i32, %c0_i32_0 : i32, i32, i32
  }
  func.func @transform_4(%arg0: i32) -> (i32, i32, i32) {
    %c0_i32 = arith.constant 0 : i32
    %c0_i32_0 = arith.constant 0 : i32
    %c0_i32_1 = arith.constant 0 : i32
    return %arg0, %c0_i32, %c0_i32_0 : i32, i32, i32
  }
}

</mosaic_0001>

<llo_original>
// kernel: tpu_custom_call.1
$region0: #{tpu_custom_call.1}
  #allocation0 [shape = 'u32[]', space=smem, size = 0x4, offset = 0x4, fixed_abs, tag = 'smem constant byte address 0x4 - core index']
  #allocation1 [shape = 'u32[144,128]{1,0:T(1,128)}', space=vmem, size = 0x12000, scoped, tag = 'internal scratch']
  %s0 = inlined_call_operand.vmem [shape: f32[2,4,192], index: 0, kind: input, shape index: {}]
  %s1 = inlined_call_operand.vmem [shape: f32[1,32], index: 1, kind: input, shape index: {}]
  %s2 = inlined_call_operand.vmem [shape: bf16[192,32], index: 2, kind: input, shape index: {}]
  %s3 = inlined_call_operand.vmem [shape: f32[2,5,32], index: 3, kind: output, shape index: {0}]
  %s4 = inlined_call_operand.vmem [shape: f32[2,3,32], index: 4, kind: output, shape index: {1}]
  %5 = xla_tuple %s3, %s4
  %s6 = sld [smem:[#allocation0]]
  $region53: #{tpu_custom_call.1} parent=0
    _
  %s8 = ssub.s32 1, %s6
  %s9 = scalar_select 0, %s8, %s6
  loop: start=0, step=1, limit=4
  $region2: #{tpu_custom_call.1} parent=0 // loop_pre_header
    _
  $region3: #{tpu_custom_call.1} parent=0 // loop_header
    %s11 = sphi 0, %s15
    %p12 = scmp.ge.s32.totalorder %s11, 4
    %s21 = sphi 0, %s23
    %s24 = sphi 0, %s21
    %s25 = sphi 0, %s24
    %s41 = sphi 0, %s25
    %s45 = sphi 0, %s45
    %s47 = sphi 0, %s45
    %s48 = sphi 0, %s47
    %s62 = sphi 0, %s48
    %s66 = sphi 0, %s66
    %s68 = sphi 0, %s66
    %s69 = sphi 0, %s68
    %s83 = sphi 0, %s69
    %s89 = sphi 0, %s91
    %s92 = sphi 0, %s89
    %s93 = sphi 0, %s92
    %s109 = sphi 0, %s93
    %s115 = sphi 0, %s117
    %s118 = sphi 0, %s115
    %s119 = sphi 0, %s118
    %s135 = sphi 0, %s119
  $region4: #{tpu_custom_call.1} parent=0 // loop_header_branch
    %14 = sbr.rel (%p12) target = $region8
  $region5: #{tpu_custom_call.1} parent=0 // loop_body
    %s16 = ssub.s32 %s11, 1
    %s17 = ssub.s32 %s11, 2
    %s18 = sadd.s32 %s11, 1
    %s19 = ssub.s32 %s11, %s18
    %p20 = scmp.eq.s32.totalorder %s19, 0
    %s22 = sadd.s32 %s21, 1
    %s23 = scalar_select %p20, %s21, %s22
    %p26 = pneg %p20
    %p27 = scmp.eq.s32.totalorder %s11, 1
    %p28 = por %p26, %p27
    %p29 = scmp.ne.s32.totalorder %s21, %s24
    %p30 = scmp.eq.s32.totalorder %s11, 0
    %p31 = por %p29, %p30
    %p32 = scmp.ne.s32.totalorder %s21, %s24
    %p33 = scmp.eq.s32.totalorder %s16, 1
    %p34 = por %p32, %p33
    %p35 = scmp.ne.s32.totalorder %s24, %s25
    %p36 = scmp.eq.s32.totalorder %s16, 0
    %p37 = por %p35, %p36
    %p38 = scmp.ne.s32.totalorder %s24, %s25
    %p39 = scmp.eq.s32.totalorder %s17, 1
    %p40 = por %p38, %p39
    %p42 = scmp.ne.s32.totalorder %s25, %s41
    %p43 = scmp.eq.s32.totalorder %s17, 0
    %p44 = por %p42, %p43
    %s46 = sadd.s32 %s45, 1
    %p49 = scmp.eq.s32.totalorder %s11, 1
    %p50 = scmp.ne.s32.totalorder %s45, %s47
    %p51 = scmp.eq.s32.totalorder %s11, 0
    %p52 = por %p50, %p51
    %p53 = scmp.ne.s32.totalorder %s45, %s47
    %p54 = scmp.eq.s32.totalorder %s16, 1
    %p55 = por %p53, %p54
    %p56 = scmp.ne.s32.totalorder %s47, %s48
    %p57 = scmp.eq.s32.totalorder %s16, 0
    %p58 = por %p56, %p57
    %p59 = scmp.ne.s32.totalorder %s47, %s48
    %p60 = scmp.eq.s32.totalorder %s17, 1
    %p61 = por %p59, %p60
    %p63 = scmp.ne.s32.totalorder %s48, %s62
    %p64 = scmp.eq.s32.totalorder %s17, 0
    %p65 = por %p63, %p64
    %s67 = sadd.s32 %s66, 1
    %p70 = scmp.eq.s32.totalorder %s11, 1
    %p71 = scmp.ne.s32.totalorder %s66, %s68
    %p72 = scmp.eq.s32.totalorder %s11, 0
    %p73 = por %p71, %p72
    %p74 = scmp.ne.s32.totalorder %s66, %s68
    %p75 = scmp.eq.s32.totalorder %s16, 1
    %p76 = por %p74, %p75
    %p77 = scmp.ne.s32.totalorder %s68, %s69
    %p78 = scmp.eq.s32.totalorder %s16, 0
    %p79 = por %p77, %p78
    %p80 = scmp.ne.s32.totalorder %s68, %s69
    %p81 = scmp.eq.s32.totalorder %s17, 1
    %p82 = por %p80, %p81
    %p84 = scmp.ne.s32.totalorder %s69, %s83
    %p85 = scmp.eq.s32.totalorder %s17, 0
    %p86 = por %p84, %p85
    %s87 = ssub.s32 %s11, %s18
    %p88 = scmp.eq.s32.totalorder %s87, 0
    %s90 = sadd.s32 %s89, 1
    %s91 = scalar_select %p88, %s89, %s90
    %p94 = pneg %p88
    %p95 = scmp.eq.s32.totalorder %s11, 1
    %p96 = por %p94, %p95
    %p97 = scmp.ne.s32.totalorder %s89, %s92
    %p98 = scmp.eq.s32.totalorder %s11, 0
    %p99 = por %p97, %p98
    %p100 = scmp.ne.s32.totalorder %s89, %s92
    %p101 = scmp.eq.s32.totalorder %s16, 1
    %p102 = por %p100, %p101
    %p103 = scmp.ne.s32.totalorder %s92, %s93
    %p104 = scmp.eq.s32.totalorder %s16, 0
    %p105 = por %p103, %p104
    %p106 = scmp.ne.s32.totalorder %s92, %s93
    %p107 = scmp.eq.s32.totalorder %s17, 1
    %p108 = por %p106, %p107
    %p110 = scmp.ne.s32.totalorder %s93, %s109
    %p111 = scmp.eq.s32.totalorder %s17, 0
    %p112 = por %p110, %p111
    %s113 = ssub.s32 %s11, %s18
    %p114 = scmp.eq.s32.totalorder %s113, 0
    %s116 = sadd.s32 %s115, 1
    %s117 = scalar_select %p114, %s115, %s116
    %p120 = pneg %p114
    %p121 = scmp.eq.s32.totalorder %s11, 1
    %p122 = por %p120, %p121
    %p123 = scmp.ne.s32.totalorder %s115, %s118
    %p124 = scmp.eq.s32.totalorder %s11, 0
    %p125 = por %p123, %p124
    %p126 = scmp.ne.s32.totalorder %s115, %s118
    %p127 = scmp.eq.s32.totalorder %s16, 1
    %p128 = por %p126, %p127
    %p129 = scmp.ne.s32.totalorder %s118, %s119
    %p130 = scmp.eq.s32.totalorder %s16, 0
    %p131 = por %p129, %p130
    %p132 = scmp.ne.s32.totalorder %s118, %s119
    %p133 = scmp.eq.s32.totalorder %s17, 1
    %p134 = por %p132, %p133
    %p136 = scmp.ne.s32.totalorder %s119, %s135
    %p137 = scmp.eq.s32.totalorder %s17, 0
    %p138 = por %p136, %p137
    %p139 = scmp.le.s32.totalorder 1, %s11
    %p140 = scmp.lt.s32.totalorder %s11, 3
    %p141 = pnand %p139, %p140
    %p142 = pneg %p141
    // Predicated region
    $region9: #{tpu_custom_call.1} parent=5 // pred_check
      _
    $region10: #{tpu_custom_call.1} parent=5 // pred_check_branch
      %144 = sbr.rel (%p141) target = $region12
    $region11: #{tpu_custom_call.1} parent=5 // pred_region
      %s145 = ssub.s32 %s11, 1
      // Predicated region
      $region13: #{tpu_custom_call.1} parent=11 // pred_check
        %p146 = pneg %p58
      $region14: #{tpu_custom_call.1} parent=11 // pred_check_branch
        %148 = sbr.rel (%p146) target = $region16
      $region15: #{tpu_custom_call.1} parent=11 // pred_region
        _
      $region16: #{tpu_custom_call.1} parent=11 // pred_fallthru
        _
      // Predicated region
      $region17: #{tpu_custom_call.1} parent=11 // pred_check
        %p149 = pneg %p79
      $region18: #{tpu_custom_call.1} parent=11 // pred_check_branch
        %151 = sbr.rel (%p149) target = $region20
      $region19: #{tpu_custom_call.1} parent=11 // pred_region
        _
      $region20: #{tpu_custom_call.1} parent=11 // pred_fallthru
        _
    $region12: #{tpu_custom_call.1} parent=5 // pred_fallthru
      _
    %p152 = scmp.lt.s32.totalorder %s11, 2
    // Predicated region
    $region21: #{tpu_custom_call.1} parent=5 // pred_check
      %p153 = pneg %p152
    $region22: #{tpu_custom_call.1} parent=5 // pred_check_branch
      %155 = sbr.rel (%p153) target = $region24
    $region23: #{tpu_custom_call.1} parent=5 // pred_region
      // Predicated region
      $region25: #{tpu_custom_call.1} parent=23 // pred_check
        %p156 = pneg %p31
      $region26: #{tpu_custom_call.1} parent=23 // pred_check_branch
        %158 = sbr.rel (%p156) target = $region28
      $region27: #{tpu_custom_call.1} parent=23 // pred_region
        %p159 = scmp.lt.s32.totalorder %s11, 1
        %s160 = scalar_select %p159, %s11, 1
        %s161 = smul.addr %s160, 2
        %s162 = smul.addr %s161, 4
        %s163 = scalar_lea.vmem %s0, %s162
      $region28: #{tpu_custom_call.1} parent=23 // pred_fallthru
        _
    $region24: #{tpu_custom_call.1} parent=5 // pred_fallthru
      _
    %p164 = scmp.le.s32.totalorder 1, %s11
    %p165 = scmp.lt.s32.totalorder %s11, 3
    %p166 = pnand %p164, %p165
    %p167 = pneg %p166
    // Predicated region
    $region29: #{tpu_custom_call.1} parent=5 // pred_check
      _
    $region30: #{tpu_custom_call.1} parent=5 // pred_check_branch
      %169 = sbr.rel (%p166) target = $region32
    $region31: #{tpu_custom_call.1} parent=5 // pred_region
      %s170 = ssub.s32 %s11, 1
      %p171 = scmp.lt.s32.totalorder %s16, 1
      %s172 = scalar_select %p171, %s16, 1
      %s173 = smul.addr %s172, 2
      %s174 = smul.addr %s173, 4
      %s175 = scalar_lea.vmem %s0, %s174
      %p176 = pneg %p37
      %p177 = pneg %p34
      %p178 = pneg %p58
      %p179 = pneg %p55
      %p180 = pneg %p79
      %p181 = pneg %p76
      %p182 = pneg %p105
      %p183 = pneg %p102
      %p184 = scmp.lt.s32.totalorder %s16, 1
      %s185 = scalar_select %p184, %s16, 1
      %s186 = smul.addr %s185, 8
      %s187 = scalar_lea.vmem %s3, %s186
      %p188 = pneg %p131
      %p189 = pneg %p128
      %p190 = scmp.lt.s32.totalorder %s16, 1
      %s191 = scalar_select %p190, %s16, 1
      %s192 = smul.addr %s191, 4
      %s193 = scalar_lea.vmem %s4, %s192
      %p194 = scmp.lt.s32.totalorder %s16, 1
      %s195 = scalar_select %p194, %s16, 1
      %s196 = smul.addr %s195, 2
      %s197 = smul.addr %s196, 4
      %s198 = scalar_lea.vmem %s0, %s197
      %p199 = scmp.lt.s32.totalorder %s16, 1
      %s200 = scalar_select %p199, %s16, 1
      %s201 = smul.addr %s200, 8
      %s202 = scalar_lea.vmem %s3, %s201
      %p203 = scmp.lt.s32.totalorder %s16, 1
      %s204 = scalar_select %p203, %s16, 1
      %s205 = smul.addr %s204, 4
      %s206 = scalar_lea.vmem %s4, %s205
      %v208 = vld [vmem:[%s198] sm:$0xff]
      %v210 = vcombine.high %v208, %v208
      %v212 = vpack.c.bf16 %v208, %v208
      %v213 = vpack.c.bf16 %v210, %v210
      %v214 = vld [vmem:[%s2] sm:$0xf]
      %v215 = vld [vmem:[%s2 + $0x4] sm:$0xf]
      %v216 = vld [vmem:[%s2 + $0x8] sm:$0xf]
      %v217 = vld [vmem:[%s2 + $0xc] sm:$0xf]
      %v218 = vld [vmem:[%s2 + $0x10] sm:$0xf]
      %v219 = vld [vmem:[%s2 + $0x14] sm:$0xf]
      %v220 = vld [vmem:[%s2 + $0x18] sm:$0xf]
      %v221 = vld [vmem:[%s2 + $0x1c] sm:$0xf]
      %v222 = vld [vmem:[%s2 + $0x20] sm:$0xf]
      %v223 = vld [vmem:[%s2 + $0x24] sm:$0xf]
      %v224 = vld [vmem:[%s2 + $0x28] sm:$0xf]
      %v225 = vld [vmem:[%s2 + $0x2c] sm:$0xf]
      %v226 = vld [vmem:[%s2 + $0x30] sm:$0xf]
      %v227 = vld [vmem:[%s2 + $0x34] sm:$0xf]
      %v228 = vld [vmem:[%s2 + $0x38] sm:$0xf]
      %v229 = vld [vmem:[%s2 + $0x3c] sm:$0xf]
      %v230 = vld [vmem:[%s2 + $0x40] sm:$0xf]
      %v231 = vld [vmem:[%s2 + $0x44] sm:$0xf]
      %v232 = vld [vmem:[%s2 + $0x48] sm:$0xf]
      %v233 = vld [vmem:[%s2 + $0x4c] sm:$0xf]
      %v234 = vld [vmem:[%s2 + $0x50] sm:$0xf]
      %v235 = vld [vmem:[%s2 + $0x54] sm:$0xf]
      %v236 = vld [vmem:[%s2 + $0x58] sm:$0xf]
      %v237 = vld [vmem:[%s2 + $0x5c] sm:$0xf]
      %v262 = vunpack.c.l.b16 %v214
      %v263 = vunpack.c.l.b16 %v215
      %v264 = vunpack.c.l.b16 %v216
      %v265 = vunpack.c.l.b16 %v217
      %v266 = vunpack.c.l.b16 %v218
      %v267 = vunpack.c.l.b16 %v219
      %v268 = vunpack.c.l.b16 %v220
      %v269 = vunpack.c.l.b16 %v221
      %v270 = vunpack.c.l.b16 %v222
      %v271 = vunpack.c.l.b16 %v223
      %v272 = vunpack.c.l.b16 %v224
      %v273 = vunpack.c.l.b16 %v225
      %v274 = vunpack.c.l.b16 %v226
      %v275 = vunpack.c.l.b16 %v227
      %v276 = vunpack.c.l.b16 %v228
      %v277 = vunpack.c.l.b16 %v229
      %v278 = vunpack.c.l.b16 %v230
      %v279 = vunpack.c.l.b16 %v231
      %v280 = vunpack.c.l.b16 %v232
      %v281 = vunpack.c.l.b16 %v233
      %v282 = vunpack.c.l.b16 %v234
      %v283 = vunpack.c.l.b16 %v235
      %v284 = vunpack.c.l.b16 %v236
      %v285 = vunpack.c.l.b16 %v237
      %v286 = vpack.c.b16 %v263, %v262
      %v287 = vpack.c.b16 %v265, %v264
      %v288 = vpack.c.b16 %v267, %v266
      %v289 = vpack.c.b16 %v269, %v268
      %v290 = vpack.c.b16 %v271, %v270
      %v291 = vpack.c.b16 %v273, %v272
      %v292 = vpack.c.b16 %v275, %v274
      %v293 = vpack.c.b16 %v277, %v276
      %v294 = vpack.c.b16 %v279, %v278
      %v295 = vpack.c.b16 %v281, %v280
      %v296 = vpack.c.b16 %v283, %v282
      %v297 = vpack.c.b16 %v285, %v284
      %vm310 = vcmask 523264
      %v312 = vsel %vm310, %v213, 0
      %314 = vmatprep.subr.bf16.mxu0 0
      %315 = vmatpush1.bf16.msra.mxu0 %v286
      %316 = vmatprep.subr.bf16.mxu0 0
      %317 = vmatpush1.bf16.msra.mxu0 %v287
      %318 = vmatprep.subr.bf16.mxu0 0
      %319 = vmatpush1.bf16.msra.mxu0 %v288
      %320 = vmatprep.subr.bf16.mxu0 0
      %321 = vmatpush1.bf16.msra.mxu0 %v289
      %322 = vmatprep.subr.bf16.mxu0 0
      %323 = vmatpush1.bf16.msra.mxu0 %v290
      %324 = vmatprep.subr.bf16.mxu0 0
      %325 = vmatpush1.bf16.msra.mxu0 %v291
      %326 = vmatprep.subr.bf16.mxu0 0
      %327 = vmatpush1.bf16.msra.mxu0 %v292
      %328 = vmatprep.subr.bf16.mxu0 0
      %329 = vmatpush1.bf16.msra.mxu0 %v293
      %330 = vmatprep.subr.bf16.mxu0 0
      %331 = vmatpush1.bf16.msra.mxu0 %v294
      %332 = vmatprep.subr.bf16.mxu0 0
      %333 = vmatpush1.bf16.msra.mxu0 %v295
      %334 = vmatprep.subr.bf16.mxu0 0
      %335 = vmatpush1.bf16.msra.mxu0 %v296
      %336 = vmatprep.subr.bf16.mxu0 0
      %337 = vmatpush1.bf16.msra.mxu0 %v297
      %338 = vmatprep.subr.bf16.mxu0 0
      %339 = vmatpush1.bf16.msra.mxu0 0
      %340 = vmatprep.subr.bf16.mxu0 0
      %341 = vmatpush1.bf16.msra.mxu0 0
      %342 = vmatprep.subr.bf16.mxu0 0
      %343 = vmatpush1.bf16.msra.mxu0 0
      %344 = vmatprep.subr.bf16.mxu0 0
      %345 = vmatpush1.bf16.msra.mxu0 0
      %346 = vmatprep.mubr.bf16.mxu0 %v312
      %347 = vmatmul.mubr.bf16.gmra.mrb[0].mxu0 %v212
      %v348 = vpop.f32.mrb[0].mxu0
      %v349 = vadd.f32 0.0, %v348
      %v350 = vpop.f32.mrb[0].mxu0
      %v351 = vpop.f32.mrb[0].mxu0
      %v352 = vpop.f32.mrb[0].mxu0
      %353 = vdwg.mxu0
      %v354 = vld [vmem:[%s1] sm:$0x1]
      %vm355 = vcmask 253952
      %356 = vst.msk [vmem:[%s202] sm:$0x1] %vm355, %v354
      %vm357 = vcmask 257024
      %358 = vst.msk [vmem:[%s202 + $0x1] sm:$0xf] %vm357, %v349
      %359 = vst.msk [vmem:[%s206] sm:$0x1] %vm355, %v354
      %vm360 = vcmask 254976
      %361 = vst.msk [vmem:[%s206 + $0x1] sm:$0x3] %vm360, %v349
      %p362 = scmp.lt.s32.totalorder %s16, 1
      %s363 = scalar_select %p362, %s16, 1
      %s364 = smul.addr %s363, 8
      %s365 = scalar_lea.vmem %s3, %s364
      %p366 = scmp.lt.s32.totalorder %s16, 1
      %s367 = scalar_select %p366, %s16, 1
      %s368 = smul.addr %s367, 4
      %s369 = scalar_lea.vmem %s4, %s368
      // Predicated region
      $region33: #{tpu_custom_call.1} parent=31 // pred_check
        %p370 = pneg %p102
      $region34: #{tpu_custom_call.1} parent=31 // pred_check_branch
        %372 = sbr.rel (%p370) target = $region36
      $region35: #{tpu_custom_call.1} parent=31 // pred_region
        _
      $region36: #{tpu_custom_call.1} parent=31 // pred_fallthru
        _
      // Predicated region
      $region37: #{tpu_custom_call.1} parent=31 // pred_check
        %p373 = pneg %p128
      $region38: #{tpu_custom_call.1} parent=31 // pred_check_branch
        %375 = sbr.rel (%p373) target = $region40
      $region39: #{tpu_custom_call.1} parent=31 // pred_region
        _
      $region40: #{tpu_custom_call.1} parent=31 // pred_fallthru
        _
    $region32: #{tpu_custom_call.1} parent=5 // pred_fallthru
      _
    %p376 = scmp.le.s32.totalorder 2, %s11
    // Predicated region
    $region41: #{tpu_custom_call.1} parent=5 // pred_check
      %p377 = pneg %p376
    $region42: #{tpu_custom_call.1} parent=5 // pred_check_branch
      %379 = sbr.rel (%p377) target = $region44
    $region43: #{tpu_custom_call.1} parent=5 // pred_region
      %s380 = ssub.s32 %s11, 2
      // Predicated region
      $region45: #{tpu_custom_call.1} parent=43 // pred_check
        %p381 = pneg %p108
      $region46: #{tpu_custom_call.1} parent=43 // pred_check_branch
        %383 = sbr.rel (%p381) target = $region48
      $region47: #{tpu_custom_call.1} parent=43 // pred_region
        %p384 = scmp.lt.s32.totalorder %s17, 1
        %s385 = scalar_select %p384, %s17, 1
        %s386 = smul.addr %s385, 8
        %s387 = scalar_lea.vmem %s3, %s386
      $region48: #{tpu_custom_call.1} parent=43 // pred_fallthru
        _
      // Predicated region
      $region49: #{tpu_custom_call.1} parent=43 // pred_check
        %p388 = pneg %p134
      $region50: #{tpu_custom_call.1} parent=43 // pred_check_branch
        %390 = sbr.rel (%p388) target = $region52
      $region51: #{tpu_custom_call.1} parent=43 // pred_region
        %p391 = scmp.lt.s32.totalorder %s17, 1
        %s392 = scalar_select %p391, %s17, 1
        %s393 = smul.addr %s392, 4
        %s394 = scalar_lea.vmem %s4, %s393
      $region52: #{tpu_custom_call.1} parent=43 // pred_fallthru
        _
    $region44: #{tpu_custom_call.1} parent=5 // pred_fallthru
      _
  $region6: #{tpu_custom_call.1} parent=0 // loop_footer
    %s15 = sadd.s32 1, %s11
  $region7: #{tpu_custom_call.1} parent=0 // loop_footer_branch
    %10 = sbr.rel target = $region3
  $region8: #{tpu_custom_call.1} parent=0 // loop_exit
    _

</llo_original>
